<compile_context>
chip_gen: v7x
topology: tpu7x:2x2x1
jax: 0.10.0
libtpu: 0.0.40
codegen_flags: <defaults>
</compile_context>

<pallas_src>
import functools
import math

import jax
import jax.numpy as jnp
from jax.experimental import pallas as pl
from jax.experimental.pallas import tpu as pltpu


def _make_dma_copy_kernel(n_chunks):
    """HBM->HBM element passthrough: n_chunks concurrent DMAs, no VMEM staging."""

    def kernel(x_hbm, o_hbm, sem):
        copies = [
            pltpu.make_async_copy(x_hbm.at[i], o_hbm.at[i], sem.at[i])
            for i in range(n_chunks)
        ]
        for cp in copies:  # keep all chunks in flight simultaneously
            cp.start()
        for cp in copies:
            cp.wait()

    return kernel


def _num_chunks(total):
    """Number of concurrent DMA chunks (largest of 8/4/2 dividing total)."""
    for cand in (8, 4, 2):
        if total % cand == 0:
            return cand
    return 1  # odd element count: single whole-array DMA


@functools.partial(jax.jit, static_argnames=("size",))
def _view_copy(tensor, size):
    """Materialized view: one HBM->HBM DMA pass, then metadata-only reshape."""
    total = math.prod(tensor.shape)
    itemsize = jnp.dtype(tensor.dtype).itemsize
    n_chunks = _num_chunks(total)
    chunk = total // n_chunks
    flat = tensor.reshape(n_chunks, chunk)  # row-major flatten, metadata-only

    out = pl.pallas_call(
        _make_dma_copy_kernel(n_chunks),
        out_shape=jax.ShapeDtypeStruct((n_chunks, chunk), tensor.dtype),
        in_specs=[pl.BlockSpec(memory_space=pl.ANY)],   # raw HBM ref, no auto-DMA
        out_specs=pl.BlockSpec(memory_space=pl.ANY),    # fresh HBM output buffer
        scratch_shapes=[pltpu.SemaphoreType.DMA((n_chunks,))],
        cost_estimate=pl.CostEstimate(
            flops=0, transcendentals=0, bytes_accessed=2 * total * itemsize
        ),
    )(flat)
    return out.reshape(size)  # metadata-only


class View:
    """JAX/Pallas equivalent of the PyTorch View(nn.Module).

    By default returns the metadata-only reshape (the optimal lowering of a
    view).  Pass materialize=True to route the element stream through the
    Pallas HBM->HBM DMA copy kernel instead.
    """

    def __init__(self, size, materialize=False):
        self.size = (size,) if isinstance(size, int) else tuple(size)
        self.materialize = materialize

    def _resolve_size(self, tensor):
        total = math.prod(tensor.shape)
        size = list(self.size)
        if -1 in size:
            idx = size.index(-1)
            known = math.prod(s for j, s in enumerate(size) if j != idx)
            size[idx] = total // known
        size = tuple(int(s) for s in size)
        assert math.prod(size) == total, "view size mismatch"
        return size

    def __call__(self, tensor):
        size = self._resolve_size(tensor)
        if not self.materialize:
            # Optimal path: a view is metadata-only — zero HBM traffic.
            return tensor.reshape(size)
        return _view_copy(tensor, size)


if __name__ == "__main__":
    k1, k2 = jax.random.split(jax.random.PRNGKey(0))

    # Small NCHW input consistent with a typical conv pipeline.
    x = jax.random.normal(k1, (2, 4, 16, 16), dtype=jnp.float32)
    ref = x.reshape(2, -1)

    # Pallas HBM->HBM DMA kernel path (materialized copy of the view).
    y_kernel = jax.block_until_ready(View(size=(2, -1), materialize=True)(x))
    assert y_kernel.shape == (2, 1024), y_kernel.shape
    assert y_kernel.dtype == x.dtype
    assert jnp.array_equal(y_kernel, ref)

    # Default (optimal, metadata-only) path — bit-identical.
    y_meta = jax.block_until_ready(View(size=(2, -1))(x))
    assert jnp.array_equal(y_meta, ref)

    # Odd element count + narrow dtype: single whole-array DMA, no tiling
    # constraints, no VMEM-overflow hazard.
    x2 = jax.random.normal(k2, (3, 5, 7), dtype=jnp.bfloat16)
    y2 = jax.block_until_ready(View(size=(-1,), materialize=True)(x2))
    assert y2.shape == (105,), y2.shape
    assert jnp.array_equal(y2, x2.reshape(-1))

    print("KERNEL_OK")
</pallas_src>

<mosaic_0001>
module attributes {stable_mosaic.version = 11 : i64} {
  func.func @kernel(%arg0: memref<8x256xf32, #tpu.memory_space<any>>, %arg1: memref<8x256xf32, #tpu.memory_space<any>>, %arg2: memref<8x!tpu.dma_semaphore, #tpu.memory_space<semaphore_mem>>) attributes {dimension_semantics = [], scalar_prefetch = 0 : i64, scratch_operands = 1 : i64, tpu.core_type = #tpu.core_type<tc>} {
    %c0_i32 = arith.constant 0 : i32
    %c0_i32_0 = arith.constant 0 : i32
    %c0_i32_1 = arith.constant 0 : i32
    %c0_i32_2 = arith.constant 0 : i32
    %0 = tpu.memref_slice %arg0[%c0_i32, %c0_i32_2] : memref<8x256xf32, #tpu.memory_space<any>> -> memref<1x256xf32, #tpu.memory_space<any>>
    %1 = tpu.memref_squeeze %0 : memref<1x256xf32, #tpu.memory_space<any>> -> memref<256xf32, #tpu.memory_space<any>>
    %c0_i32_3 = arith.constant 0 : i32
    %2 = tpu.memref_slice %arg1[%c0_i32_0, %c0_i32_3] : memref<8x256xf32, #tpu.memory_space<any>> -> memref<1x256xf32, #tpu.memory_space<any>>
    %3 = tpu.memref_squeeze %2 : memref<1x256xf32, #tpu.memory_space<any>> -> memref<256xf32, #tpu.memory_space<any>>
    %4 = tpu.memref_slice %arg2[%c0_i32_1] : memref<8x!tpu.dma_semaphore, #tpu.memory_space<semaphore_mem>> -> memref<1x!tpu.dma_semaphore, #tpu.memory_space<semaphore_mem>>
    %5 = tpu.memref_squeeze %4 : memref<1x!tpu.dma_semaphore, #tpu.memory_space<semaphore_mem>> -> memref<!tpu.dma_semaphore, #tpu.memory_space<semaphore_mem>>
    tpu.enqueue_dma source(%1 : memref<256xf32, #tpu.memory_space<any>>) target(%3 : memref<256xf32, #tpu.memory_space<any>>) target_semaphore(%5 : memref<!tpu.dma_semaphore, #tpu.memory_space<semaphore_mem>>)
    %c1_i32 = arith.constant 1 : i32
    %c1_i32_4 = arith.constant 1 : i32
    %c1_i32_5 = arith.constant 1 : i32
    %c0_i32_6 = arith.constant 0 : i32
    %6 = tpu.memref_slice %arg0[%c1_i32, %c0_i32_6] : memref<8x256xf32, #tpu.memory_space<any>> -> memref<1x256xf32, #tpu.memory_space<any>>
    %7 = tpu.memref_squeeze %6 : memref<1x256xf32, #tpu.memory_space<any>> -> memref<256xf32, #tpu.memory_space<any>>
    %c0_i32_7 = arith.constant 0 : i32
    %8 = tpu.memref_slice %arg1[%c1_i32_4, %c0_i32_7] : memref<8x256xf32, #tpu.memory_space<any>> -> memref<1x256xf32, #tpu.memory_space<any>>
    %9 = tpu.memref_squeeze %8 : memref<1x256xf32, #tpu.memory_space<any>> -> memref<256xf32, #tpu.memory_space<any>>
    %10 = tpu.memref_slice %arg2[%c1_i32_5] : memref<8x!tpu.dma_semaphore, #tpu.memory_space<semaphore_mem>> -> memref<1x!tpu.dma_semaphore, #tpu.memory_space<semaphore_mem>>
    %11 = tpu.memref_squeeze %10 : memref<1x!tpu.dma_semaphore, #tpu.memory_space<semaphore_mem>> -> memref<!tpu.dma_semaphore, #tpu.memory_space<semaphore_mem>>
    tpu.enqueue_dma source(%7 : memref<256xf32, #tpu.memory_space<any>>) target(%9 : memref<256xf32, #tpu.memory_space<any>>) target_semaphore(%11 : memref<!tpu.dma_semaphore, #tpu.memory_space<semaphore_mem>>)
    %c2_i32 = arith.constant 2 : i32
    %c2_i32_8 = arith.constant 2 : i32
    %c2_i32_9 = arith.constant 2 : i32
    %c0_i32_10 = arith.constant 0 : i32
    %12 = tpu.memref_slice %arg0[%c2_i32, %c0_i32_10] : memref<8x256xf32, #tpu.memory_space<any>> -> memref<1x256xf32, #tpu.memory_space<any>>
    %13 = tpu.memref_squeeze %12 : memref<1x256xf32, #tpu.memory_space<any>> -> memref<256xf32, #tpu.memory_space<any>>
    %c0_i32_11 = arith.constant 0 : i32
    %14 = tpu.memref_slice %arg1[%c2_i32_8, %c0_i32_11] : memref<8x256xf32, #tpu.memory_space<any>> -> memref<1x256xf32, #tpu.memory_space<any>>
    %15 = tpu.memref_squeeze %14 : memref<1x256xf32, #tpu.memory_space<any>> -> memref<256xf32, #tpu.memory_space<any>>
    %16 = tpu.memref_slice %arg2[%c2_i32_9] : memref<8x!tpu.dma_semaphore, #tpu.memory_space<semaphore_mem>> -> memref<1x!tpu.dma_semaphore, #tpu.memory_space<semaphore_mem>>
    %17 = tpu.memref_squeeze %16 : memref<1x!tpu.dma_semaphore, #tpu.memory_space<semaphore_mem>> -> memref<!tpu.dma_semaphore, #tpu.memory_space<semaphore_mem>>
    tpu.enqueue_dma source(%13 : memref<256xf32, #tpu.memory_space<any>>) target(%15 : memref<256xf32, #tpu.memory_space<any>>) target_semaphore(%17 : memref<!tpu.dma_semaphore, #tpu.memory_space<semaphore_mem>>)
    %c3_i32 = arith.constant 3 : i32
    %c3_i32_12 = arith.constant 3 : i32
    %c3_i32_13 = arith.constant 3 : i32
    %c0_i32_14 = arith.constant 0 : i32
    %18 = tpu.memref_slice %arg0[%c3_i32, %c0_i32_14] : memref<8x256xf32, #tpu.memory_space<any>> -> memref<1x256xf32, #tpu.memory_space<any>>
    %19 = tpu.memref_squeeze %18 : memref<1x256xf32, #tpu.memory_space<any>> -> memref<256xf32, #tpu.memory_space<any>>
    %c0_i32_15 = arith.constant 0 : i32
    %20 = tpu.memref_slice %arg1[%c3_i32_12, %c0_i32_15] : memref<8x256xf32, #tpu.memory_space<any>> -> memref<1x256xf32, #tpu.memory_space<any>>
    %21 = tpu.memref_squeeze %20 : memref<1x256xf32, #tpu.memory_space<any>> -> memref<256xf32, #tpu.memory_space<any>>
    %22 = tpu.memref_slice %arg2[%c3_i32_13] : memref<8x!tpu.dma_semaphore, #tpu.memory_space<semaphore_mem>> -> memref<1x!tpu.dma_semaphore, #tpu.memory_space<semaphore_mem>>
    %23 = tpu.memref_squeeze %22 : memref<1x!tpu.dma_semaphore, #tpu.memory_space<semaphore_mem>> -> memref<!tpu.dma_semaphore, #tpu.memory_space<semaphore_mem>>
    tpu.enqueue_dma source(%19 : memref<256xf32, #tpu.memory_space<any>>) target(%21 : memref<256xf32, #tpu.memory_space<any>>) target_semaphore(%23 : memref<!tpu.dma_semaphore, #tpu.memory_space<semaphore_mem>>)
    %c4_i32 = arith.constant 4 : i32
    %c4_i32_16 = arith.constant 4 : i32
    %c4_i32_17 = arith.constant 4 : i32
    %c0_i32_18 = arith.constant 0 : i32
    %24 = tpu.memref_slice %arg0[%c4_i32, %c0_i32_18] : memref<8x256xf32, #tpu.memory_space<any>> -> memref<1x256xf32, #tpu.memory_space<any>>
    %25 = tpu.memref_squeeze %24 : memref<1x256xf32, #tpu.memory_space<any>> -> memref<256xf32, #tpu.memory_space<any>>
    %c0_i32_19 = arith.constant 0 : i32
    %26 = tpu.memref_slice %arg1[%c4_i32_16, %c0_i32_19] : memref<8x256xf32, #tpu.memory_space<any>> -> memref<1x256xf32, #tpu.memory_space<any>>
    %27 = tpu.memref_squeeze %26 : memref<1x256xf32, #tpu.memory_space<any>> -> memref<256xf32, #tpu.memory_space<any>>
    %28 = tpu.memref_slice %arg2[%c4_i32_17] : memref<8x!tpu.dma_semaphore, #tpu.memory_space<semaphore_mem>> -> memref<1x!tpu.dma_semaphore, #tpu.memory_space<semaphore_mem>>
    %29 = tpu.memref_squeeze %28 : memref<1x!tpu.dma_semaphore, #tpu.memory_space<semaphore_mem>> -> memref<!tpu.dma_semaphore, #tpu.memory_space<semaphore_mem>>
    tpu.enqueue_dma source(%25 : memref<256xf32, #tpu.memory_space<any>>) target(%27 : memref<256xf32, #tpu.memory_space<any>>) target_semaphore(%29 : memref<!tpu.dma_semaphore, #tpu.memory_space<semaphore_mem>>)
    %c5_i32 = arith.constant 5 : i32
    %c5_i32_20 = arith.constant 5 : i32
    %c5_i32_21 = arith.constant 5 : i32
    %c0_i32_22 = arith.constant 0 : i32
    %30 = tpu.memref_slice %arg0[%c5_i32, %c0_i32_22] : memref<8x256xf32, #tpu.memory_space<any>> -> memref<1x256xf32, #tpu.memory_space<any>>
    %31 = tpu.memref_squeeze %30 : memref<1x256xf32, #tpu.memory_space<any>> -> memref<256xf32, #tpu.memory_space<any>>
    %c0_i32_23 = arith.constant 0 : i32
    %32 = tpu.memref_slice %arg1[%c5_i32_20, %c0_i32_23] : memref<8x256xf32, #tpu.memory_space<any>> -> memref<1x256xf32, #tpu.memory_space<any>>
    %33 = tpu.memref_squeeze %32 : memref<1x256xf32, #tpu.memory_space<any>> -> memref<256xf32, #tpu.memory_space<any>>
    %34 = tpu.memref_slice %arg2[%c5_i32_21] : memref<8x!tpu.dma_semaphore, #tpu.memory_space<semaphore_mem>> -> memref<1x!tpu.dma_semaphore, #tpu.memory_space<semaphore_mem>>
    %35 = tpu.memref_squeeze %34 : memref<1x!tpu.dma_semaphore, #tpu.memory_space<semaphore_mem>> -> memref<!tpu.dma_semaphore, #tpu.memory_space<semaphore_mem>>
    tpu.enqueue_dma source(%31 : memref<256xf32, #tpu.memory_space<any>>) target(%33 : memref<256xf32, #tpu.memory_space<any>>) target_semaphore(%35 : memref<!tpu.dma_semaphore, #tpu.memory_space<semaphore_mem>>)
    %c6_i32 = arith.constant 6 : i32
    %c6_i32_24 = arith.constant 6 : i32
    %c6_i32_25 = arith.constant 6 : i32
    %c0_i32_26 = arith.constant 0 : i32
    %36 = tpu.memref_slice %arg0[%c6_i32, %c0_i32_26] : memref<8x256xf32, #tpu.memory_space<any>> -> memref<1x256xf32, #tpu.memory_space<any>>
    %37 = tpu.memref_squeeze %36 : memref<1x256xf32, #tpu.memory_space<any>> -> memref<256xf32, #tpu.memory_space<any>>
    %c0_i32_27 = arith.constant 0 : i32
    %38 = tpu.memref_slice %arg1[%c6_i32_24, %c0_i32_27] : memref<8x256xf32, #tpu.memory_space<any>> -> memref<1x256xf32, #tpu.memory_space<any>>
    %39 = tpu.memref_squeeze %38 : memref<1x256xf32, #tpu.memory_space<any>> -> memref<256xf32, #tpu.memory_space<any>>
    %40 = tpu.memref_slice %arg2[%c6_i32_25] : memref<8x!tpu.dma_semaphore, #tpu.memory_space<semaphore_mem>> -> memref<1x!tpu.dma_semaphore, #tpu.memory_space<semaphore_mem>>
    %41 = tpu.memref_squeeze %40 : memref<1x!tpu.dma_semaphore, #tpu.memory_space<semaphore_mem>> -> memref<!tpu.dma_semaphore, #tpu.memory_space<semaphore_mem>>
    tpu.enqueue_dma source(%37 : memref<256xf32, #tpu.memory_space<any>>) target(%39 : memref<256xf32, #tpu.memory_space<any>>) target_semaphore(%41 : memref<!tpu.dma_semaphore, #tpu.memory_space<semaphore_mem>>)
    %c7_i32 = arith.constant 7 : i32
    %c7_i32_28 = arith.constant 7 : i32
    %c7_i32_29 = arith.constant 7 : i32
    %c0_i32_30 = arith.constant 0 : i32
    %42 = tpu.memref_slice %arg0[%c7_i32, %c0_i32_30] : memref<8x256xf32, #tpu.memory_space<any>> -> memref<1x256xf32, #tpu.memory_space<any>>
    %43 = tpu.memref_squeeze %42 : memref<1x256xf32, #tpu.memory_space<any>> -> memref<256xf32, #tpu.memory_space<any>>
    %c0_i32_31 = arith.constant 0 : i32
    %44 = tpu.memref_slice %arg1[%c7_i32_28, %c0_i32_31] : memref<8x256xf32, #tpu.memory_space<any>> -> memref<1x256xf32, #tpu.memory_space<any>>
    %45 = tpu.memref_squeeze %44 : memref<1x256xf32, #tpu.memory_space<any>> -> memref<256xf32, #tpu.memory_space<any>>
    %46 = tpu.memref_slice %arg2[%c7_i32_29] : memref<8x!tpu.dma_semaphore, #tpu.memory_space<semaphore_mem>> -> memref<1x!tpu.dma_semaphore, #tpu.memory_space<semaphore_mem>>
    %47 = tpu.memref_squeeze %46 : memref<1x!tpu.dma_semaphore, #tpu.memory_space<semaphore_mem>> -> memref<!tpu.dma_semaphore, #tpu.memory_space<semaphore_mem>>
    tpu.enqueue_dma source(%43 : memref<256xf32, #tpu.memory_space<any>>) target(%45 : memref<256xf32, #tpu.memory_space<any>>) target_semaphore(%47 : memref<!tpu.dma_semaphore, #tpu.memory_space<semaphore_mem>>)
    %c0_i32_32 = arith.constant 0 : i32
    %c0_i32_33 = arith.constant 0 : i32
    %c0_i32_34 = arith.constant 0 : i32
    %c0_i32_35 = arith.constant 0 : i32
    %48 = tpu.memref_slice %arg0[%c0_i32_32, %c0_i32_35] : memref<8x256xf32, #tpu.memory_space<any>> -> memref<1x256xf32, #tpu.memory_space<any>>
    %49 = tpu.memref_squeeze %48 : memref<1x256xf32, #tpu.memory_space<any>> -> memref<256xf32, #tpu.memory_space<any>>
    %c0_i32_36 = arith.constant 0 : i32
    %50 = tpu.memref_slice %arg1[%c0_i32_33, %c0_i32_36] : memref<8x256xf32, #tpu.memory_space<any>> -> memref<1x256xf32, #tpu.memory_space<any>>
    %51 = tpu.memref_squeeze %50 : memref<1x256xf32, #tpu.memory_space<any>> -> memref<256xf32, #tpu.memory_space<any>>
    %52 = tpu.memref_slice %arg2[%c0_i32_34] : memref<8x!tpu.dma_semaphore, #tpu.memory_space<semaphore_mem>> -> memref<1x!tpu.dma_semaphore, #tpu.memory_space<semaphore_mem>>
    %53 = tpu.memref_squeeze %52 : memref<1x!tpu.dma_semaphore, #tpu.memory_space<semaphore_mem>> -> memref<!tpu.dma_semaphore, #tpu.memory_space<semaphore_mem>>
    tpu.wait_dma2 semaphore(%53 : memref<!tpu.dma_semaphore, #tpu.memory_space<semaphore_mem>>) src(%49 : memref<256xf32, #tpu.memory_space<any>>) dst(%51 : memref<256xf32, #tpu.memory_space<any>>)
    %c1_i32_37 = arith.constant 1 : i32
    %c1_i32_38 = arith.constant 1 : i32
    %c1_i32_39 = arith.constant 1 : i32
    %c0_i32_40 = arith.constant 0 : i32
    %54 = tpu.memref_slice %arg0[%c1_i32_37, %c0_i32_40] : memref<8x256xf32, #tpu.memory_space<any>> -> memref<1x256xf32, #tpu.memory_space<any>>
    %55 = tpu.memref_squeeze %54 : memref<1x256xf32, #tpu.memory_space<any>> -> memref<256xf32, #tpu.memory_space<any>>
    %c0_i32_41 = arith.constant 0 : i32
    %56 = tpu.memref_slice %arg1[%c1_i32_38, %c0_i32_41] : memref<8x256xf32, #tpu.memory_space<any>> -> memref<1x256xf32, #tpu.memory_space<any>>
    %57 = tpu.memref_squeeze %56 : memref<1x256xf32, #tpu.memory_space<any>> -> memref<256xf32, #tpu.memory_space<any>>
    %58 = tpu.memref_slice %arg2[%c1_i32_39] : memref<8x!tpu.dma_semaphore, #tpu.memory_space<semaphore_mem>> -> memref<1x!tpu.dma_semaphore, #tpu.memory_space<semaphore_mem>>
    %59 = tpu.memref_squeeze %58 : memref<1x!tpu.dma_semaphore, #tpu.memory_space<semaphore_mem>> -> memref<!tpu.dma_semaphore, #tpu.memory_space<semaphore_mem>>
    tpu.wait_dma2 semaphore(%59 : memref<!tpu.dma_semaphore, #tpu.memory_space<semaphore_mem>>) src(%55 : memref<256xf32, #tpu.memory_space<any>>) dst(%57 : memref<256xf32, #tpu.memory_space<any>>)
    %c2_i32_42 = arith.constant 2 : i32
    %c2_i32_43 = arith.constant 2 : i32
    %c2_i32_44 = arith.constant 2 : i32
    %c0_i32_45 = arith.constant 0 : i32
    %60 = tpu.memref_slice %arg0[%c2_i32_42, %c0_i32_45] : memref<8x256xf32, #tpu.memory_space<any>> -> memref<1x256xf32, #tpu.memory_space<any>>
    %61 = tpu.memref_squeeze %60 : memref<1x256xf32, #tpu.memory_space<any>> -> memref<256xf32, #tpu.memory_space<any>>
    %c0_i32_46 = arith.constant 0 : i32
    %62 = tpu.memref_slice %arg1[%c2_i32_43, %c0_i32_46] : memref<8x256xf32, #tpu.memory_space<any>> -> memref<1x256xf32, #tpu.memory_space<any>>
    %63 = tpu.memref_squeeze %62 : memref<1x256xf32, #tpu.memory_space<any>> -> memref<256xf32, #tpu.memory_space<any>>
    %64 = tpu.memref_slice %arg2[%c2_i32_44] : memref<8x!tpu.dma_semaphore, #tpu.memory_space<semaphore_mem>> -> memref<1x!tpu.dma_semaphore, #tpu.memory_space<semaphore_mem>>
    %65 = tpu.memref_squeeze %64 : memref<1x!tpu.dma_semaphore, #tpu.memory_space<semaphore_mem>> -> memref<!tpu.dma_semaphore, #tpu.memory_space<semaphore_mem>>
    tpu.wait_dma2 semaphore(%65 : memref<!tpu.dma_semaphore, #tpu.memory_space<semaphore_mem>>) src(%61 : memref<256xf32, #tpu.memory_space<any>>) dst(%63 : memref<256xf32, #tpu.memory_space<any>>)
    %c3_i32_47 = arith.constant 3 : i32
    %c3_i32_48 = arith.constant 3 : i32
    %c3_i32_49 = arith.constant 3 : i32
    %c0_i32_50 = arith.constant 0 : i32
    %66 = tpu.memref_slice %arg0[%c3_i32_47, %c0_i32_50] : memref<8x256xf32, #tpu.memory_space<any>> -> memref<1x256xf32, #tpu.memory_space<any>>
    %67 = tpu.memref_squeeze %66 : memref<1x256xf32, #tpu.memory_space<any>> -> memref<256xf32, #tpu.memory_space<any>>
    %c0_i32_51 = arith.constant 0 : i32
    %68 = tpu.memref_slice %arg1[%c3_i32_48, %c0_i32_51] : memref<8x256xf32, #tpu.memory_space<any>> -> memref<1x256xf32, #tpu.memory_space<any>>
    %69 = tpu.memref_squeeze %68 : memref<1x256xf32, #tpu.memory_space<any>> -> memref<256xf32, #tpu.memory_space<any>>
    %70 = tpu.memref_slice %arg2[%c3_i32_49] : memref<8x!tpu.dma_semaphore, #tpu.memory_space<semaphore_mem>> -> memref<1x!tpu.dma_semaphore, #tpu.memory_space<semaphore_mem>>
    %71 = tpu.memref_squeeze %70 : memref<1x!tpu.dma_semaphore, #tpu.memory_space<semaphore_mem>> -> memref<!tpu.dma_semaphore, #tpu.memory_space<semaphore_mem>>
    tpu.wait_dma2 semaphore(%71 : memref<!tpu.dma_semaphore, #tpu.memory_space<semaphore_mem>>) src(%67 : memref<256xf32, #tpu.memory_space<any>>) dst(%69 : memref<256xf32, #tpu.memory_space<any>>)
    %c4_i32_52 = arith.constant 4 : i32
    %c4_i32_53 = arith.constant 4 : i32
    %c4_i32_54 = arith.constant 4 : i32
    %c0_i32_55 = arith.constant 0 : i32
    %72 = tpu.memref_slice %arg0[%c4_i32_52, %c0_i32_55] : memref<8x256xf32, #tpu.memory_space<any>> -> memref<1x256xf32, #tpu.memory_space<any>>
    %73 = tpu.memref_squeeze %72 : memref<1x256xf32, #tpu.memory_space<any>> -> memref<256xf32, #tpu.memory_space<any>>
    %c0_i32_56 = arith.constant 0 : i32
    %74 = tpu.memref_slice %arg1[%c4_i32_53, %c0_i32_56] : memref<8x256xf32, #tpu.memory_space<any>> -> memref<1x256xf32, #tpu.memory_space<any>>
    %75 = tpu.memref_squeeze %74 : memref<1x256xf32, #tpu.memory_space<any>> -> memref<256xf32, #tpu.memory_space<any>>
    %76 = tpu.memref_slice %arg2[%c4_i32_54] : memref<8x!tpu.dma_semaphore, #tpu.memory_space<semaphore_mem>> -> memref<1x!tpu.dma_semaphore, #tpu.memory_space<semaphore_mem>>
    %77 = tpu.memref_squeeze %76 : memref<1x!tpu.dma_semaphore, #tpu.memory_space<semaphore_mem>> -> memref<!tpu.dma_semaphore, #tpu.memory_space<semaphore_mem>>
    tpu.wait_dma2 semaphore(%77 : memref<!tpu.dma_semaphore, #tpu.memory_space<semaphore_mem>>) src(%73 : memref<256xf32, #tpu.memory_space<any>>) dst(%75 : memref<256xf32, #tpu.memory_space<any>>)
    %c5_i32_57 = arith.constant 5 : i32
    %c5_i32_58 = arith.constant 5 : i32
    %c5_i32_59 = arith.constant 5 : i32
    %c0_i32_60 = arith.constant 0 : i32
    %78 = tpu.memref_slice %arg0[%c5_i32_57, %c0_i32_60] : memref<8x256xf32, #tpu.memory_space<any>> -> memref<1x256xf32, #tpu.memory_space<any>>
    %79 = tpu.memref_squeeze %78 : memref<1x256xf32, #tpu.memory_space<any>> -> memref<256xf32, #tpu.memory_space<any>>
    %c0_i32_61 = arith.constant 0 : i32
    %80 = tpu.memref_slice %arg1[%c5_i32_58, %c0_i32_61] : memref<8x256xf32, #tpu.memory_space<any>> -> memref<1x256xf32, #tpu.memory_space<any>>
    %81 = tpu.memref_squeeze %80 : memref<1x256xf32, #tpu.memory_space<any>> -> memref<256xf32, #tpu.memory_space<any>>
    %82 = tpu.memref_slice %arg2[%c5_i32_59] : memref<8x!tpu.dma_semaphore, #tpu.memory_space<semaphore_mem>> -> memref<1x!tpu.dma_semaphore, #tpu.memory_space<semaphore_mem>>
    %83 = tpu.memref_squeeze %82 : memref<1x!tpu.dma_semaphore, #tpu.memory_space<semaphore_mem>> -> memref<!tpu.dma_semaphore, #tpu.memory_space<semaphore_mem>>
    tpu.wait_dma2 semaphore(%83 : memref<!tpu.dma_semaphore, #tpu.memory_space<semaphore_mem>>) src(%79 : memref<256xf32, #tpu.memory_space<any>>) dst(%81 : memref<256xf32, #tpu.memory_space<any>>)
    %c6_i32_62 = arith.constant 6 : i32
    %c6_i32_63 = arith.constant 6 : i32
    %c6_i32_64 = arith.constant 6 : i32
    %c0_i32_65 = arith.constant 0 : i32
    %84 = tpu.memref_slice %arg0[%c6_i32_62, %c0_i32_65] : memref<8x256xf32, #tpu.memory_space<any>> -> memref<1x256xf32, #tpu.memory_space<any>>
    %85 = tpu.memref_squeeze %84 : memref<1x256xf32, #tpu.memory_space<any>> -> memref<256xf32, #tpu.memory_space<any>>
    %c0_i32_66 = arith.constant 0 : i32
    %86 = tpu.memref_slice %arg1[%c6_i32_63, %c0_i32_66] : memref<8x256xf32, #tpu.memory_space<any>> -> memref<1x256xf32, #tpu.memory_space<any>>
    %87 = tpu.memref_squeeze %86 : memref<1x256xf32, #tpu.memory_space<any>> -> memref<256xf32, #tpu.memory_space<any>>
    %88 = tpu.memref_slice %arg2[%c6_i32_64] : memref<8x!tpu.dma_semaphore, #tpu.memory_space<semaphore_mem>> -> memref<1x!tpu.dma_semaphore, #tpu.memory_space<semaphore_mem>>
    %89 = tpu.memref_squeeze %88 : memref<1x!tpu.dma_semaphore, #tpu.memory_space<semaphore_mem>> -> memref<!tpu.dma_semaphore, #tpu.memory_space<semaphore_mem>>
    tpu.wait_dma2 semaphore(%89 : memref<!tpu.dma_semaphore, #tpu.memory_space<semaphore_mem>>) src(%85 : memref<256xf32, #tpu.memory_space<any>>) dst(%87 : memref<256xf32, #tpu.memory_space<any>>)
    %c7_i32_67 = arith.constant 7 : i32
    %c7_i32_68 = arith.constant 7 : i32
    %c7_i32_69 = arith.constant 7 : i32
    %c0_i32_70 = arith.constant 0 : i32
    %90 = tpu.memref_slice %arg0[%c7_i32_67, %c0_i32_70] : memref<8x256xf32, #tpu.memory_space<any>> -> memref<1x256xf32, #tpu.memory_space<any>>
    %91 = tpu.memref_squeeze %90 : memref<1x256xf32, #tpu.memory_space<any>> -> memref<256xf32, #tpu.memory_space<any>>
    %c0_i32_71 = arith.constant 0 : i32
    %92 = tpu.memref_slice %arg1[%c7_i32_68, %c0_i32_71] : memref<8x256xf32, #tpu.memory_space<any>> -> memref<1x256xf32, #tpu.memory_space<any>>
    %93 = tpu.memref_squeeze %92 : memref<1x256xf32, #tpu.memory_space<any>> -> memref<256xf32, #tpu.memory_space<any>>
    %94 = tpu.memref_slice %arg2[%c7_i32_69] : memref<8x!tpu.dma_semaphore, #tpu.memory_space<semaphore_mem>> -> memref<1x!tpu.dma_semaphore, #tpu.memory_space<semaphore_mem>>
    %95 = tpu.memref_squeeze %94 : memref<1x!tpu.dma_semaphore, #tpu.memory_space<semaphore_mem>> -> memref<!tpu.dma_semaphore, #tpu.memory_space<semaphore_mem>>
    tpu.wait_dma2 semaphore(%95 : memref<!tpu.dma_semaphore, #tpu.memory_space<semaphore_mem>>) src(%91 : memref<256xf32, #tpu.memory_space<any>>) dst(%93 : memref<256xf32, #tpu.memory_space<any>>)
    return
  }
}

</mosaic_0001>

<llo_original>
// kernel: _view_copy.1
$region0: #{_view_copy.1}
  #allocation0 [shape = 'u32[]', space=smem, size = 0x4, offset = 0x4, fixed_abs, tag = 'smem constant byte address 0x4 - core index']
  #allocation1 [shape = 'u32[144,128]{1,0:T(1,128)}', space=vmem, size = 0x12000, scoped, tag = 'internal scratch']
  #allocation2 [shape = 's32[8]{0}', space=sflag, size = 0x20, scoped, tag = 'scratch operand']
  #allocation3 [shape = 's32[]', space=sflag, size = 0x4, offset = 0, fixed_abs, tag = 'sflag constant byte address 0x0 - dummy sync flag']
  #allocation4 [shape = 's32[]', space=sflag, size = 0x4, offset = 0, fixed_abs, tag = 'sflag constant byte address 0x0 - dummy sync flag']
  #allocation5 [shape = 's32[]', space=sflag, size = 0x4, offset = 0, fixed_abs, tag = 'sflag constant byte address 0x0 - dummy sync flag']
  #allocation6 [shape = 's32[]', space=sflag, size = 0x4, offset = 0, fixed_abs, tag = 'sflag constant byte address 0x0 - dummy sync flag']
  #allocation7 [shape = 's32[]', space=sflag, size = 0x4, offset = 0, fixed_abs, tag = 'sflag constant byte address 0x0 - dummy sync flag']
  #allocation8 [shape = 's32[]', space=sflag, size = 0x4, offset = 0, fixed_abs, tag = 'sflag constant byte address 0x0 - dummy sync flag']
  #allocation9 [shape = 's32[]', space=sflag, size = 0x4, offset = 0, fixed_abs, tag = 'sflag constant byte address 0x0 - dummy sync flag']
  #allocation10 [shape = 's32[]', space=sflag, size = 0x4, offset = 0, fixed_abs, tag = 'sflag constant byte address 0x0 - dummy sync flag']
  %s0 = inlined_call_operand.vmem [shape: f32[8,256], index: 0, kind: input, shape index: {}]
  %s1 = inlined_call_operand.vmem [shape: f32[8,256], index: 1, kind: output, shape index: {}]
  %s2 = sld [smem:[#allocation0]]
  $region242: #{_view_copy.1} parent=0
    _
  %s4 = ssub.s32 1, %s2
  %s5 = scalar_select 0, %s4, %s2
  %p7 = scmp.lt.u32.totalorder 1, 8
  %p8 = pneg %p7
  // Predicated region
  $region2: #{_view_copy.1} parent=0 // pred_check
    _
  $region3: #{_view_copy.1} parent=0 // pred_check_branch
    %10 = sbr.rel (%p7) target = $region5
  $region4: #{_view_copy.1} parent=0 // pred_region
    %s27 = sand.u32 1, 7
    %p28 = scmp.eq.s32.totalorder %s27, 0
    %p29 = pneg %p28
    // Predicated region
    $region17: #{_view_copy.1} parent=4 // pred_check
      _
    $region18: #{_view_copy.1} parent=4 // pred_check_branch
      %31 = sbr.rel (%p28) target = $region20
    $region19: #{_view_copy.1} parent=4 // pred_region
      %s32 = sand.u32 1, 7
      %s33 = ssub.s32 1, %s32
      %s34 = scalar_lea.vmem %s0, %s33
      %s35 = ssub.s32 1, %s32
      %s36 = scalar_lea.vmem %s1, %s35
      %s37 = sshllo.u32 0, %s32
      loop: start=0, step=1, limit=1
      $region21: #{_view_copy.1} parent=19 // loop_pre_header
        _
      $region22: #{_view_copy.1} parent=19 // loop_header
        %s39 = sphi 0, %s43
        %p40 = scmp.ge.s32.totalorder %s39, 1
        %s44 = sphi %s34, %s34
        %s45 = sphi %s36, %s36
      $region23: #{_view_copy.1} parent=19 // loop_header_branch
        %42 = sbr.rel (%p40) target = $region27
      $region24: #{_view_copy.1} parent=19 // loop_body
        %v46 = vld [vmem:[%s44] sm:%s37]
        %47 = vst [vmem:[%s45] sm:%s37] %v46
        %v48 = vld [vmem:[%s44 + $0x8] sm:%s37]
        %49 = vst [vmem:[%s45 + $0x8] sm:%s37] %v48
      $region25: #{_view_copy.1} parent=19 // loop_footer
        %s43 = sadd.s32 1, %s39
      $region26: #{_view_copy.1} parent=19 // loop_footer_branch
        %38 = sbr.rel target = $region22
      $region27: #{_view_copy.1} parent=19 // loop_exit
        _
    $region20: #{_view_copy.1} parent=4 // pred_fallthru
      _
  $region5: #{_view_copy.1} parent=0 // pred_fallthru
    _
  // Predicated region
  $region6: #{_view_copy.1} parent=0 // pred_check
    %p11 = pneg %p7
  $region7: #{_view_copy.1} parent=0 // pred_check_branch
    %13 = sbr.rel (%p11) target = $region9
  $region8: #{_view_copy.1} parent=0 // pred_region
    %s14 = sshllo.u32 0, 1
    loop: start=0, step=1, limit=1
    $region10: #{_view_copy.1} parent=8 // loop_pre_header
      _
    $region11: #{_view_copy.1} parent=8 // loop_header
      %s16 = sphi 0, %s20
      %p17 = scmp.ge.s32.totalorder %s16, 1
      %s21 = sphi %s0, %s0
      %s22 = sphi %s1, %s1
    $region12: #{_view_copy.1} parent=8 // loop_header_branch
      %19 = sbr.rel (%p17) target = $region16
    $region13: #{_view_copy.1} parent=8 // loop_body
      %v23 = vld [vmem:[%s21] sm:%s14]
      %24 = vst [vmem:[%s22] sm:%s14] %v23
      %v25 = vld [vmem:[%s21 + $0x8] sm:%s14]
      %26 = vst [vmem:[%s22 + $0x8] sm:%s14] %v25
    $region14: #{_view_copy.1} parent=8 // loop_footer
      %s20 = sadd.s32 1, %s16
    $region15: #{_view_copy.1} parent=8 // loop_footer_branch
      %15 = sbr.rel target = $region11
    $region16: #{_view_copy.1} parent=8 // loop_exit
      _
  $region9: #{_view_copy.1} parent=0 // pred_fallthru
    _
  // Predicated region
  $region28: #{_view_copy.1} parent=0 // pred_check
    _
  $region29: #{_view_copy.1} parent=0 // pred_check_branch
    %52 = sbr.rel (0) target = $region31
  $region30: #{_view_copy.1} parent=0 // pred_region
    %53 = vsyncadd [#allocation2], 32
  $region31: #{_view_copy.1} parent=0 // pred_fallthru
    _
  %s54 = scalar_lea.vmem %s0, 1
  %s55 = scalar_lea.vmem %s1, 1
  %s56 = scalar_lea.sflag [#allocation2], 1
  %p58 = scmp.lt.u32.totalorder 1, 8
  %p59 = pneg %p58
  // Predicated region
  $region32: #{_view_copy.1} parent=0 // pred_check
    _
  $region33: #{_view_copy.1} parent=0 // pred_check_branch
    %61 = sbr.rel (%p58) target = $region35
  $region34: #{_view_copy.1} parent=0 // pred_region
    %s78 = sand.u32 1, 7
    %p79 = scmp.eq.s32.totalorder %s78, 0
    %p80 = pneg %p79
    // Predicated region
    $region47: #{_view_copy.1} parent=34 // pred_check
      _
    $region48: #{_view_copy.1} parent=34 // pred_check_branch
      %82 = sbr.rel (%p79) target = $region50
    $region49: #{_view_copy.1} parent=34 // pred_region
      %s83 = sand.u32 1, 7
      %s84 = ssub.s32 1, %s83
      %s85 = scalar_lea.vmem %s54, %s84
      %s86 = ssub.s32 1, %s83
      %s87 = scalar_lea.vmem %s55, %s86
      %s88 = sshllo.u32 0, %s83
      loop: start=0, step=1, limit=1
      $region51: #{_view_copy.1} parent=49 // loop_pre_header
        _
      $region52: #{_view_copy.1} parent=49 // loop_header
        %s90 = sphi 0, %s94
        %p91 = scmp.ge.s32.totalorder %s90, 1
        %s95 = sphi %s85, %s85
        %s96 = sphi %s87, %s87
      $region53: #{_view_copy.1} parent=49 // loop_header_branch
        %93 = sbr.rel (%p91) target = $region57
      $region54: #{_view_copy.1} parent=49 // loop_body
        %v97 = vld [vmem:[%s95] sm:%s88]
        %98 = vst [vmem:[%s96] sm:%s88] %v97
        %v99 = vld [vmem:[%s95 + $0x8] sm:%s88]
        %100 = vst [vmem:[%s96 + $0x8] sm:%s88] %v99
      $region55: #{_view_copy.1} parent=49 // loop_footer
        %s94 = sadd.s32 1, %s90
      $region56: #{_view_copy.1} parent=49 // loop_footer_branch
        %89 = sbr.rel target = $region52
      $region57: #{_view_copy.1} parent=49 // loop_exit
        _
    $region50: #{_view_copy.1} parent=34 // pred_fallthru
      _
  $region35: #{_view_copy.1} parent=0 // pred_fallthru
    _
  // Predicated region
  $region36: #{_view_copy.1} parent=0 // pred_check
    %p62 = pneg %p58
  $region37: #{_view_copy.1} parent=0 // pred_check_branch
    %64 = sbr.rel (%p62) target = $region39
  $region38: #{_view_copy.1} parent=0 // pred_region
    %s65 = sshllo.u32 0, 1
    loop: start=0, step=1, limit=1
    $region40: #{_view_copy.1} parent=38 // loop_pre_header
      _
    $region41: #{_view_copy.1} parent=38 // loop_header
      %s67 = sphi 0, %s71
      %p68 = scmp.ge.s32.totalorder %s67, 1
      %s72 = sphi %s54, %s54
      %s73 = sphi %s55, %s55
    $region42: #{_view_copy.1} parent=38 // loop_header_branch
      %70 = sbr.rel (%p68) target = $region46
    $region43: #{_view_copy.1} parent=38 // loop_body
      %v74 = vld [vmem:[%s72] sm:%s65]
      %75 = vst [vmem:[%s73] sm:%s65] %v74
      %v76 = vld [vmem:[%s72 + $0x8] sm:%s65]
      %77 = vst [vmem:[%s73 + $0x8] sm:%s65] %v76
    $region44: #{_view_copy.1} parent=38 // loop_footer
      %s71 = sadd.s32 1, %s67
    $region45: #{_view_copy.1} parent=38 // loop_footer_branch
      %66 = sbr.rel target = $region41
    $region46: #{_view_copy.1} parent=38 // loop_exit
      _
  $region39: #{_view_copy.1} parent=0 // pred_fallthru
    _
  // Predicated region
  $region58: #{_view_copy.1} parent=0 // pred_check
    _
  $region59: #{_view_copy.1} parent=0 // pred_check_branch
    %103 = sbr.rel (0) target = $region61
  $region60: #{_view_copy.1} parent=0 // pred_region
    %104 = vsyncadd %s56, 32
  $region61: #{_view_copy.1} parent=0 // pred_fallthru
    _
  %s105 = scalar_lea.vmem %s0, 2
  %s106 = scalar_lea.vmem %s1, 2
  %s107 = scalar_lea.sflag [#allocation2], 2
  %p109 = scmp.lt.u32.totalorder 1, 8
  %p110 = pneg %p109
  // Predicated region
  $region62: #{_view_copy.1} parent=0 // pred_check
    _
  $region63: #{_view_copy.1} parent=0 // pred_check_branch
    %112 = sbr.rel (%p109) target = $region65
  $region64: #{_view_copy.1} parent=0 // pred_region
    %s129 = sand.u32 1, 7
    %p130 = scmp.eq.s32.totalorder %s129, 0
    %p131 = pneg %p130
    // Predicated region
    $region77: #{_view_copy.1} parent=64 // pred_check
      _
    $region78: #{_view_copy.1} parent=64 // pred_check_branch
      %133 = sbr.rel (%p130) target = $region80
    $region79: #{_view_copy.1} parent=64 // pred_region
      %s134 = sand.u32 1, 7
      %s135 = ssub.s32 1, %s134
      %s136 = scalar_lea.vmem %s105, %s135
      %s137 = ssub.s32 1, %s134
      %s138 = scalar_lea.vmem %s106, %s137
      %s139 = sshllo.u32 0, %s134
      loop: start=0, step=1, limit=1
      $region81: #{_view_copy.1} parent=79 // loop_pre_header
        _
      $region82: #{_view_copy.1} parent=79 // loop_header
        %s141 = sphi 0, %s145
        %p142 = scmp.ge.s32.totalorder %s141, 1
        %s146 = sphi %s136, %s136
        %s147 = sphi %s138, %s138
      $region83: #{_view_copy.1} parent=79 // loop_header_branch
        %144 = sbr.rel (%p142) target = $region87
      $region84: #{_view_copy.1} parent=79 // loop_body
        %v148 = vld [vmem:[%s146] sm:%s139]
        %149 = vst [vmem:[%s147] sm:%s139] %v148
        %v150 = vld [vmem:[%s146 + $0x8] sm:%s139]
        %151 = vst [vmem:[%s147 + $0x8] sm:%s139] %v150
      $region85: #{_view_copy.1} parent=79 // loop_footer
        %s145 = sadd.s32 1, %s141
      $region86: #{_view_copy.1} parent=79 // loop_footer_branch
        %140 = sbr.rel target = $region82
      $region87: #{_view_copy.1} parent=79 // loop_exit
        _
    $region80: #{_view_copy.1} parent=64 // pred_fallthru
      _
  $region65: #{_view_copy.1} parent=0 // pred_fallthru
    _
  // Predicated region
  $region66: #{_view_copy.1} parent=0 // pred_check
    %p113 = pneg %p109
  $region67: #{_view_copy.1} parent=0 // pred_check_branch
    %115 = sbr.rel (%p113) target = $region69
  $region68: #{_view_copy.1} parent=0 // pred_region
    %s116 = sshllo.u32 0, 1
    loop: start=0, step=1, limit=1
    $region70: #{_view_copy.1} parent=68 // loop_pre_header
      _
    $region71: #{_view_copy.1} parent=68 // loop_header
      %s118 = sphi 0, %s122
      %p119 = scmp.ge.s32.totalorder %s118, 1
      %s123 = sphi %s105, %s105
      %s124 = sphi %s106, %s106
    $region72: #{_view_copy.1} parent=68 // loop_header_branch
      %121 = sbr.rel (%p119) target = $region76
    $region73: #{_view_copy.1} parent=68 // loop_body
      %v125 = vld [vmem:[%s123] sm:%s116]
      %126 = vst [vmem:[%s124] sm:%s116] %v125
      %v127 = vld [vmem:[%s123 + $0x8] sm:%s116]
      %128 = vst [vmem:[%s124 + $0x8] sm:%s116] %v127
    $region74: #{_view_copy.1} parent=68 // loop_footer
      %s122 = sadd.s32 1, %s118
    $region75: #{_view_copy.1} parent=68 // loop_footer_branch
      %117 = sbr.rel target = $region71
    $region76: #{_view_copy.1} parent=68 // loop_exit
      _
  $region69: #{_view_copy.1} parent=0 // pred_fallthru
    _
  // Predicated region
  $region88: #{_view_copy.1} parent=0 // pred_check
    _
  $region89: #{_view_copy.1} parent=0 // pred_check_branch
    %154 = sbr.rel (0) target = $region91
  $region90: #{_view_copy.1} parent=0 // pred_region
    %155 = vsyncadd %s107, 32
  $region91: #{_view_copy.1} parent=0 // pred_fallthru
    _
  %s156 = scalar_lea.vmem %s0, 3
  %s157 = scalar_lea.vmem %s1, 3
  %s158 = scalar_lea.sflag [#allocation2], 3
  %p160 = scmp.lt.u32.totalorder 1, 8
  %p161 = pneg %p160
  // Predicated region
  $region92: #{_view_copy.1} parent=0 // pred_check
    _
  $region93: #{_view_copy.1} parent=0 // pred_check_branch
    %163 = sbr.rel (%p160) target = $region95
  $region94: #{_view_copy.1} parent=0 // pred_region
    %s180 = sand.u32 1, 7
    %p181 = scmp.eq.s32.totalorder %s180, 0
    %p182 = pneg %p181
    // Predicated region
    $region107: #{_view_copy.1} parent=94 // pred_check
      _
    $region108: #{_view_copy.1} parent=94 // pred_check_branch
      %184 = sbr.rel (%p181) target = $region110
    $region109: #{_view_copy.1} parent=94 // pred_region
      %s185 = sand.u32 1, 7
      %s186 = ssub.s32 1, %s185
      %s187 = scalar_lea.vmem %s156, %s186
      %s188 = ssub.s32 1, %s185
      %s189 = scalar_lea.vmem %s157, %s188
      %s190 = sshllo.u32 0, %s185
      loop: start=0, step=1, limit=1
      $region111: #{_view_copy.1} parent=109 // loop_pre_header
        _
      $region112: #{_view_copy.1} parent=109 // loop_header
        %s192 = sphi 0, %s196
        %p193 = scmp.ge.s32.totalorder %s192, 1
        %s197 = sphi %s187, %s187
        %s198 = sphi %s189, %s189
      $region113: #{_view_copy.1} parent=109 // loop_header_branch
        %195 = sbr.rel (%p193) target = $region117
      $region114: #{_view_copy.1} parent=109 // loop_body
        %v199 = vld [vmem:[%s197] sm:%s190]
        %200 = vst [vmem:[%s198] sm:%s190] %v199
        %v201 = vld [vmem:[%s197 + $0x8] sm:%s190]
        %202 = vst [vmem:[%s198 + $0x8] sm:%s190] %v201
      $region115: #{_view_copy.1} parent=109 // loop_footer
        %s196 = sadd.s32 1, %s192
      $region116: #{_view_copy.1} parent=109 // loop_footer_branch
        %191 = sbr.rel target = $region112
      $region117: #{_view_copy.1} parent=109 // loop_exit
        _
    $region110: #{_view_copy.1} parent=94 // pred_fallthru
      _
  $region95: #{_view_copy.1} parent=0 // pred_fallthru
    _
  // Predicated region
  $region96: #{_view_copy.1} parent=0 // pred_check
    %p164 = pneg %p160
  $region97: #{_view_copy.1} parent=0 // pred_check_branch
    %166 = sbr.rel (%p164) target = $region99
  $region98: #{_view_copy.1} parent=0 // pred_region
    %s167 = sshllo.u32 0, 1
    loop: start=0, step=1, limit=1
    $region100: #{_view_copy.1} parent=98 // loop_pre_header
      _
    $region101: #{_view_copy.1} parent=98 // loop_header
      %s169 = sphi 0, %s173
      %p170 = scmp.ge.s32.totalorder %s169, 1
      %s174 = sphi %s156, %s156
      %s175 = sphi %s157, %s157
    $region102: #{_view_copy.1} parent=98 // loop_header_branch
      %172 = sbr.rel (%p170) target = $region106
    $region103: #{_view_copy.1} parent=98 // loop_body
      %v176 = vld [vmem:[%s174] sm:%s167]
      %177 = vst [vmem:[%s175] sm:%s167] %v176
      %v178 = vld [vmem:[%s174 + $0x8] sm:%s167]
      %179 = vst [vmem:[%s175 + $0x8] sm:%s167] %v178
    $region104: #{_view_copy.1} parent=98 // loop_footer
      %s173 = sadd.s32 1, %s169
    $region105: #{_view_copy.1} parent=98 // loop_footer_branch
      %168 = sbr.rel target = $region101
    $region106: #{_view_copy.1} parent=98 // loop_exit
      _
  $region99: #{_view_copy.1} parent=0 // pred_fallthru
    _
  // Predicated region
  $region118: #{_view_copy.1} parent=0 // pred_check
    _
  $region119: #{_view_copy.1} parent=0 // pred_check_branch
    %205 = sbr.rel (0) target = $region121
  $region120: #{_view_copy.1} parent=0 // pred_region
    %206 = vsyncadd %s158, 32
  $region121: #{_view_copy.1} parent=0 // pred_fallthru
    _
  %s207 = scalar_lea.vmem %s0, 4
  %s208 = scalar_lea.vmem %s1, 4
  %s209 = scalar_lea.sflag [#allocation2], 4
  %p211 = scmp.lt.u32.totalorder 1, 8
  %p212 = pneg %p211
  // Predicated region
  $region122: #{_view_copy.1} parent=0 // pred_check
    _
  $region123: #{_view_copy.1} parent=0 // pred_check_branch
    %214 = sbr.rel (%p211) target = $region125
  $region124: #{_view_copy.1} parent=0 // pred_region
    %s231 = sand.u32 1, 7
    %p232 = scmp.eq.s32.totalorder %s231, 0
    %p233 = pneg %p232
    // Predicated region
    $region137: #{_view_copy.1} parent=124 // pred_check
      _
    $region138: #{_view_copy.1} parent=124 // pred_check_branch
      %235 = sbr.rel (%p232) target = $region140
    $region139: #{_view_copy.1} parent=124 // pred_region
      %s236 = sand.u32 1, 7
      %s237 = ssub.s32 1, %s236
      %s238 = scalar_lea.vmem %s207, %s237
      %s239 = ssub.s32 1, %s236
      %s240 = scalar_lea.vmem %s208, %s239
      %s241 = sshllo.u32 0, %s236
      loop: start=0, step=1, limit=1
      $region141: #{_view_copy.1} parent=139 // loop_pre_header
        _
      $region142: #{_view_copy.1} parent=139 // loop_header
        %s243 = sphi 0, %s247
        %p244 = scmp.ge.s32.totalorder %s243, 1
        %s248 = sphi %s238, %s238
        %s249 = sphi %s240, %s240
      $region143: #{_view_copy.1} parent=139 // loop_header_branch
        %246 = sbr.rel (%p244) target = $region147
      $region144: #{_view_copy.1} parent=139 // loop_body
        %v250 = vld [vmem:[%s248] sm:%s241]
        %251 = vst [vmem:[%s249] sm:%s241] %v250
        %v252 = vld [vmem:[%s248 + $0x8] sm:%s241]
        %253 = vst [vmem:[%s249 + $0x8] sm:%s241] %v252
      $region145: #{_view_copy.1} parent=139 // loop_footer
        %s247 = sadd.s32 1, %s243
      $region146: #{_view_copy.1} parent=139 // loop_footer_branch
        %242 = sbr.rel target = $region142
      $region147: #{_view_copy.1} parent=139 // loop_exit
        _
    $region140: #{_view_copy.1} parent=124 // pred_fallthru
      _
  $region125: #{_view_copy.1} parent=0 // pred_fallthru
    _
  // Predicated region
  $region126: #{_view_copy.1} parent=0 // pred_check
    %p215 = pneg %p211
  $region127: #{_view_copy.1} parent=0 // pred_check_branch
    %217 = sbr.rel (%p215) target = $region129
  $region128: #{_view_copy.1} parent=0 // pred_region
    %s218 = sshllo.u32 0, 1
    loop: start=0, step=1, limit=1
    $region130: #{_view_copy.1} parent=128 // loop_pre_header
      _
    $region131: #{_view_copy.1} parent=128 // loop_header
      %s220 = sphi 0, %s224
      %p221 = scmp.ge.s32.totalorder %s220, 1
      %s225 = sphi %s207, %s207
      %s226 = sphi %s208, %s208
    $region132: #{_view_copy.1} parent=128 // loop_header_branch
      %223 = sbr.rel (%p221) target = $region136
    $region133: #{_view_copy.1} parent=128 // loop_body
      %v227 = vld [vmem:[%s225] sm:%s218]
      %228 = vst [vmem:[%s226] sm:%s218] %v227
      %v229 = vld [vmem:[%s225 + $0x8] sm:%s218]
      %230 = vst [vmem:[%s226 + $0x8] sm:%s218] %v229
    $region134: #{_view_copy.1} parent=128 // loop_footer
      %s224 = sadd.s32 1, %s220
    $region135: #{_view_copy.1} parent=128 // loop_footer_branch
      %219 = sbr.rel target = $region131
    $region136: #{_view_copy.1} parent=128 // loop_exit
      _
  $region129: #{_view_copy.1} parent=0 // pred_fallthru
    _
  // Predicated region
  $region148: #{_view_copy.1} parent=0 // pred_check
    _
  $region149: #{_view_copy.1} parent=0 // pred_check_branch
    %256 = sbr.rel (0) target = $region151
  $region150: #{_view_copy.1} parent=0 // pred_region
    %257 = vsyncadd %s209, 32
  $region151: #{_view_copy.1} parent=0 // pred_fallthru
    _
  %s258 = scalar_lea.vmem %s0, 5
  %s259 = scalar_lea.vmem %s1, 5
  %s260 = scalar_lea.sflag [#allocation2], 5
  %p262 = scmp.lt.u32.totalorder 1, 8
  %p263 = pneg %p262
  // Predicated region
  $region152: #{_view_copy.1} parent=0 // pred_check
    _
  $region153: #{_view_copy.1} parent=0 // pred_check_branch
    %265 = sbr.rel (%p262) target = $region155
  $region154: #{_view_copy.1} parent=0 // pred_region
    %s282 = sand.u32 1, 7
    %p283 = scmp.eq.s32.totalorder %s282, 0
    %p284 = pneg %p283
    // Predicated region
    $region167: #{_view_copy.1} parent=154 // pred_check
      _
    $region168: #{_view_copy.1} parent=154 // pred_check_branch
      %286 = sbr.rel (%p283) target = $region170
    $region169: #{_view_copy.1} parent=154 // pred_region
      %s287 = sand.u32 1, 7
      %s288 = ssub.s32 1, %s287
      %s289 = scalar_lea.vmem %s258, %s288
      %s290 = ssub.s32 1, %s287
      %s291 = scalar_lea.vmem %s259, %s290
      %s292 = sshllo.u32 0, %s287
      loop: start=0, step=1, limit=1
      $region171: #{_view_copy.1} parent=169 // loop_pre_header
        _
      $region172: #{_view_copy.1} parent=169 // loop_header
        %s294 = sphi 0, %s298
        %p295 = scmp.ge.s32.totalorder %s294, 1
        %s299 = sphi %s289, %s289
        %s300 = sphi %s291, %s291
      $region173: #{_view_copy.1} parent=169 // loop_header_branch
        %297 = sbr.rel (%p295) target = $region177
      $region174: #{_view_copy.1} parent=169 // loop_body
        %v301 = vld [vmem:[%s299] sm:%s292]
        %302 = vst [vmem:[%s300] sm:%s292] %v301
        %v303 = vld [vmem:[%s299 + $0x8] sm:%s292]
        %304 = vst [vmem:[%s300 + $0x8] sm:%s292] %v303
      $region175: #{_view_copy.1} parent=169 // loop_footer
        %s298 = sadd.s32 1, %s294
      $region176: #{_view_copy.1} parent=169 // loop_footer_branch
        %293 = sbr.rel target = $region172
      $region177: #{_view_copy.1} parent=169 // loop_exit
        _
    $region170: #{_view_copy.1} parent=154 // pred_fallthru
      _
  $region155: #{_view_copy.1} parent=0 // pred_fallthru
    _
  // Predicated region
  $region156: #{_view_copy.1} parent=0 // pred_check
    %p266 = pneg %p262
  $region157: #{_view_copy.1} parent=0 // pred_check_branch
    %268 = sbr.rel (%p266) target = $region159
  $region158: #{_view_copy.1} parent=0 // pred_region
    %s269 = sshllo.u32 0, 1
    loop: start=0, step=1, limit=1
    $region160: #{_view_copy.1} parent=158 // loop_pre_header
      _
    $region161: #{_view_copy.1} parent=158 // loop_header
      %s271 = sphi 0, %s275
      %p272 = scmp.ge.s32.totalorder %s271, 1
      %s276 = sphi %s258, %s258
      %s277 = sphi %s259, %s259
    $region162: #{_view_copy.1} parent=158 // loop_header_branch
      %274 = sbr.rel (%p272) target = $region166
    $region163: #{_view_copy.1} parent=158 // loop_body
      %v278 = vld [vmem:[%s276] sm:%s269]
      %279 = vst [vmem:[%s277] sm:%s269] %v278
      %v280 = vld [vmem:[%s276 + $0x8] sm:%s269]
      %281 = vst [vmem:[%s277 + $0x8] sm:%s269] %v280
    $region164: #{_view_copy.1} parent=158 // loop_footer
      %s275 = sadd.s32 1, %s271
    $region165: #{_view_copy.1} parent=158 // loop_footer_branch
      %270 = sbr.rel target = $region161
    $region166: #{_view_copy.1} parent=158 // loop_exit
      _
  $region159: #{_view_copy.1} parent=0 // pred_fallthru
    _
  // Predicated region
  $region178: #{_view_copy.1} parent=0 // pred_check
    _
  $region179: #{_view_copy.1} parent=0 // pred_check_branch
    %307 = sbr.rel (0) target = $region181
  $region180: #{_view_copy.1} parent=0 // pred_region
    %308 = vsyncadd %s260, 32
  $region181: #{_view_copy.1} parent=0 // pred_fallthru
    _
  %s309 = scalar_lea.vmem %s0, 6
  %s310 = scalar_lea.vmem %s1, 6
  %s311 = scalar_lea.sflag [#allocation2], 6
  %p313 = scmp.lt.u32.totalorder 1, 8
  %p314 = pneg %p313
  // Predicated region
  $region182: #{_view_copy.1} parent=0 // pred_check
    _
  $region183: #{_view_copy.1} parent=0 // pred_check_branch
    %316 = sbr.rel (%p313) target = $region185
  $region184: #{_view_copy.1} parent=0 // pred_region
    %s333 = sand.u32 1, 7
    %p334 = scmp.eq.s32.totalorder %s333, 0
    %p335 = pneg %p334
    // Predicated region
    $region197: #{_view_copy.1} parent=184 // pred_check
      _
    $region198: #{_view_copy.1} parent=184 // pred_check_branch
      %337 = sbr.rel (%p334) target = $region200
    $region199: #{_view_copy.1} parent=184 // pred_region
      %s338 = sand.u32 1, 7
      %s339 = ssub.s32 1, %s338
      %s340 = scalar_lea.vmem %s309, %s339
      %s341 = ssub.s32 1, %s338
      %s342 = scalar_lea.vmem %s310, %s341
      %s343 = sshllo.u32 0, %s338
      loop: start=0, step=1, limit=1
      $region201: #{_view_copy.1} parent=199 // loop_pre_header
        _
      $region202: #{_view_copy.1} parent=199 // loop_header
        %s345 = sphi 0, %s349
        %p346 = scmp.ge.s32.totalorder %s345, 1
        %s350 = sphi %s340, %s340
        %s351 = sphi %s342, %s342
      $region203: #{_view_copy.1} parent=199 // loop_header_branch
        %348 = sbr.rel (%p346) target = $region207
      $region204: #{_view_copy.1} parent=199 // loop_body
        %v352 = vld [vmem:[%s350] sm:%s343]
        %353 = vst [vmem:[%s351] sm:%s343] %v352
        %v354 = vld [vmem:[%s350 + $0x8] sm:%s343]
        %355 = vst [vmem:[%s351 + $0x8] sm:%s343] %v354
      $region205: #{_view_copy.1} parent=199 // loop_footer
        %s349 = sadd.s32 1, %s345
      $region206: #{_view_copy.1} parent=199 // loop_footer_branch
        %344 = sbr.rel target = $region202
      $region207: #{_view_copy.1} parent=199 // loop_exit
        _
    $region200: #{_view_copy.1} parent=184 // pred_fallthru
      _
  $region185: #{_view_copy.1} parent=0 // pred_fallthru
    _
  // Predicated region
  $region186: #{_view_copy.1} parent=0 // pred_check
    %p317 = pneg %p313
  $region187: #{_view_copy.1} parent=0 // pred_check_branch
    %319 = sbr.rel (%p317) target = $region189
  $region188: #{_view_copy.1} parent=0 // pred_region
    %s320 = sshllo.u32 0, 1
    loop: start=0, step=1, limit=1
    $region190: #{_view_copy.1} parent=188 // loop_pre_header
      _
    $region191: #{_view_copy.1} parent=188 // loop_header
      %s322 = sphi 0, %s326
      %p323 = scmp.ge.s32.totalorder %s322, 1
      %s327 = sphi %s309, %s309
      %s328 = sphi %s310, %s310
    $region192: #{_view_copy.1} parent=188 // loop_header_branch
      %325 = sbr.rel (%p323) target = $region196
    $region193: #{_view_copy.1} parent=188 // loop_body
      %v329 = vld [vmem:[%s327] sm:%s320]
      %330 = vst [vmem:[%s328] sm:%s320] %v329
      %v331 = vld [vmem:[%s327 + $0x8] sm:%s320]
      %332 = vst [vmem:[%s328 + $0x8] sm:%s320] %v331
    $region194: #{_view_copy.1} parent=188 // loop_footer
      %s326 = sadd.s32 1, %s322
    $region195: #{_view_copy.1} parent=188 // loop_footer_branch
      %321 = sbr.rel target = $region191
    $region196: #{_view_copy.1} parent=188 // loop_exit
      _
  $region189: #{_view_copy.1} parent=0 // pred_fallthru
    _
  // Predicated region
  $region208: #{_view_copy.1} parent=0 // pred_check
    _
  $region209: #{_view_copy.1} parent=0 // pred_check_branch
    %358 = sbr.rel (0) target = $region211
  $region210: #{_view_copy.1} parent=0 // pred_region
    %359 = vsyncadd %s311, 32
  $region211: #{_view_copy.1} parent=0 // pred_fallthru
    _
  %s360 = scalar_lea.vmem %s0, 7
  %s361 = scalar_lea.vmem %s1, 7
  %s362 = scalar_lea.sflag [#allocation2], 7
  %p364 = scmp.lt.u32.totalorder 1, 8
  %p365 = pneg %p364
  // Predicated region
  $region212: #{_view_copy.1} parent=0 // pred_check
    _
  $region213: #{_view_copy.1} parent=0 // pred_check_branch
    %367 = sbr.rel (%p364) target = $region215
  $region214: #{_view_copy.1} parent=0 // pred_region
    %s384 = sand.u32 1, 7
    %p385 = scmp.eq.s32.totalorder %s384, 0
    %p386 = pneg %p385
    // Predicated region
    $region227: #{_view_copy.1} parent=214 // pred_check
      _
    $region228: #{_view_copy.1} parent=214 // pred_check_branch
      %388 = sbr.rel (%p385) target = $region230
    $region229: #{_view_copy.1} parent=214 // pred_region
      %s389 = sand.u32 1, 7
      %s390 = ssub.s32 1, %s389
      %s391 = scalar_lea.vmem %s360, %s390
      %s392 = ssub.s32 1, %s389
      %s393 = scalar_lea.vmem %s361, %s392
      %s394 = sshllo.u32 0, %s389
      loop: start=0, step=1, limit=1
      $region231: #{_view_copy.1} parent=229 // loop_pre_header
        _
      $region232: #{_view_copy.1} parent=229 // loop_header
        %s396 = sphi 0, %s400
        %p397 = scmp.ge.s32.totalorder %s396, 1
        %s401 = sphi %s391, %s391
        %s402 = sphi %s393, %s393
      $region233: #{_view_copy.1} parent=229 // loop_header_branch
        %399 = sbr.rel (%p397) target = $region237
      $region234: #{_view_copy.1} parent=229 // loop_body
        %v403 = vld [vmem:[%s401] sm:%s394]
        %404 = vst [vmem:[%s402] sm:%s394] %v403
        %v405 = vld [vmem:[%s401 + $0x8] sm:%s394]
        %406 = vst [vmem:[%s402 + $0x8] sm:%s394] %v405
      $region235: #{_view_copy.1} parent=229 // loop_footer
        %s400 = sadd.s32 1, %s396
      $region236: #{_view_copy.1} parent=229 // loop_footer_branch
        %395 = sbr.rel target = $region232
      $region237: #{_view_copy.1} parent=229 // loop_exit
        _
    $region230: #{_view_copy.1} parent=214 // pred_fallthru
      _
  $region215: #{_view_copy.1} parent=0 // pred_fallthru
    _
  // Predicated region
  $region216: #{_view_copy.1} parent=0 // pred_check
    %p368 = pneg %p364
  $region217: #{_view_copy.1} parent=0 // pred_check_branch
    %370 = sbr.rel (%p368) target = $region219
  $region218: #{_view_copy.1} parent=0 // pred_region
    %s371 = sshllo.u32 0, 1
    loop: start=0, step=1, limit=1
    $region220: #{_view_copy.1} parent=218 // loop_pre_header
      _
    $region221: #{_view_copy.1} parent=218 // loop_header
      %s373 = sphi 0, %s377
      %p374 = scmp.ge.s32.totalorder %s373, 1
      %s378 = sphi %s360, %s360
      %s379 = sphi %s361, %s361
    $region222: #{_view_copy.1} parent=218 // loop_header_branch
      %376 = sbr.rel (%p374) target = $region226
    $region223: #{_view_copy.1} parent=218 // loop_body
      %v380 = vld [vmem:[%s378] sm:%s371]
      %381 = vst [vmem:[%s379] sm:%s371] %v380
      %v382 = vld [vmem:[%s378 + $0x8] sm:%s371]
      %383 = vst [vmem:[%s379 + $0x8] sm:%s371] %v382
    $region224: #{_view_copy.1} parent=218 // loop_footer
      %s377 = sadd.s32 1, %s373
    $region225: #{_view_copy.1} parent=218 // loop_footer_branch
      %372 = sbr.rel target = $region221
    $region226: #{_view_copy.1} parent=218 // loop_exit
      _
  $region219: #{_view_copy.1} parent=0 // pred_fallthru
    _
  // Predicated region
  $region238: #{_view_copy.1} parent=0 // pred_check
    _
  $region239: #{_view_copy.1} parent=0 // pred_check_branch
    %409 = sbr.rel (0) target = $region241
  $region240: #{_view_copy.1} parent=0 // pred_region
    %410 = vsyncadd %s362, 32
  $region241: #{_view_copy.1} parent=0 // pred_fallthru
    _
  %412 = dma.done [#allocation2], 32
  %414 = dma.done %s56, 32
  %416 = dma.done %s107, 32
  %418 = dma.done %s158, 32
  %420 = dma.done %s209, 32
  %422 = dma.done %s260, 32
  %424 = dma.done %s311, 32
  %426 = dma.done %s362, 32
  %427 = vsyncmov [#allocation2]
  %s428 = vpop.sfrf %427
  %p429 = scmp.eq.s32.totalorder %s428, 0
  %p430 = pneg %p429
  %432 = shalt.err (%p430)
  %s433 = scalar_lea.sflag [#allocation2], 1
  %434 = vsyncmov %s433
  %s435 = vpop.sfrf %434
  %p436 = scmp.eq.s32.totalorder %s435, 0
  %p437 = pneg %p436
  %439 = shalt.err (%p437)
  %s440 = scalar_lea.sflag [#allocation2], 2
  %441 = vsyncmov %s440
  %s442 = vpop.sfrf %441
  %p443 = scmp.eq.s32.totalorder %s442, 0
  %p444 = pneg %p443
  %446 = shalt.err (%p444)
  %s447 = scalar_lea.sflag [#allocation2], 3
  %448 = vsyncmov %s447
  %s449 = vpop.sfrf %448
  %p450 = scmp.eq.s32.totalorder %s449, 0
  %p451 = pneg %p450
  %453 = shalt.err (%p451)
  %s454 = scalar_lea.sflag [#allocation2], 4
  %455 = vsyncmov %s454
  %s456 = vpop.sfrf %455
  %p457 = scmp.eq.s32.totalorder %s456, 0
  %p458 = pneg %p457
  %460 = shalt.err (%p458)
  %s461 = scalar_lea.sflag [#allocation2], 5
  %462 = vsyncmov %s461
  %s463 = vpop.sfrf %462
  %p464 = scmp.eq.s32.totalorder %s463, 0
  %p465 = pneg %p464
  %467 = shalt.err (%p465)
  %s468 = scalar_lea.sflag [#allocation2], 6
  %469 = vsyncmov %s468
  %s470 = vpop.sfrf %469
  %p471 = scmp.eq.s32.totalorder %s470, 0
  %p472 = pneg %p471
  %474 = shalt.err (%p472)
  %s475 = scalar_lea.sflag [#allocation2], 7
  %476 = vsyncmov %s475
  %s477 = vpop.sfrf %476
  %p478 = scmp.eq.s32.totalorder %s477, 0
  %p479 = pneg %p478
  %481 = shalt.err (%p479)

</llo_original>
